<compile_context>
chip_gen: v7x
topology: tpu7x:2x2x1
jax: 0.10.0
libtpu: 0.0.40
codegen_flags: <defaults>
</compile_context>

<pallas_src>
import functools

import jax
import jax.numpy as jnp
from jax.experimental import pallas as pl
from jax.experimental.pallas import tpu as pltpu

_LANE = 128
_MAX_LANE_BLOCKS = 16  # cols capped at 16 * 128 = 2048 lanes


def _tlu_kernel(x_ref, o_ref, *, thr):
    # Elementwise clamp on a lane-dense VMEM tile (pure VPU work).
    # Bounds are cast to the tile dtype so integer / low-precision inputs do
    # not get promoted to float.
    x = x_ref[...]
    lo = jnp.asarray(-thr, x.dtype)
    hi = jnp.asarray(thr, x.dtype)
    o_ref[...] = jnp.clip(x, lo, hi)


def _vmem_capacity_bytes() -> int:
    """Trace-time VMEM capacity query with a conservative (v7x) fallback."""
    try:
        return int(pltpu.get_tpu_info().vmem_capacity_bytes)
    except Exception:
        return 64 * 1024 * 1024


def _tlu_2d(x2d: jax.Array, thr: float) -> jax.Array:
    """Run the Pallas clamp over a lane-dense (rows, cols) slab."""
    rows, cols = x2d.shape
    dtype = x2d.dtype
    itemsize = jnp.dtype(dtype).itemsize
    # Sublane multiple per dtype: 8 for f32, 16 for bf16, 32 for int8/fp8.
    sublane = max(8, 32 // itemsize)

    # Generation-aware block sizing: bigger blocks where VMEM allows it.
    vmem_cap = _vmem_capacity_bytes()
    if vmem_cap >= 96 * 1024 * 1024:
        # v5e / v6e: 128 MiB physical VMEM.
        target_block_bytes = 16 * 1024 * 1024
        vmem_limit = 80 * 1024 * 1024  # 2 in-bufs + 2 out-bufs = 64 MiB + slack
    else:
        # v7x: 64 MiB physical VMEM -> keep blocks <= vmem/8.
        target_block_bytes = 8 * 1024 * 1024
        vmem_limit = 40 * 1024 * 1024  # 2 in-bufs + 2 out-bufs = 32 MiB + slack

    block_rows = (target_block_bytes // (cols * itemsize)) // sublane * sublane
    block_rows = max(sublane, block_rows)
    if block_rows >= rows:
        # Whole slab fits one full-extent block (exempt from the (8, 128)
        # divisibility rule). No forced multi-block split: on single-TC chips
        # that is pure grid-step overhead, and "parallel" alone would not
        # shard across v7x TensorCores anyway.
        block_rows = rows

    grid = (pl.cdiv(rows, block_rows),)

    n_elems = rows * cols
    cost = pl.CostEstimate(
        flops=n_elems,                      # ~2 compares/selects per element
        transcendentals=0,
        bytes_accessed=2 * n_elems * itemsize,  # 1 read + 1 write per element
    )

    return pl.pallas_call(
        functools.partial(_tlu_kernel, thr=float(thr)),
        out_shape=jax.ShapeDtypeStruct((rows, cols), dtype),
        grid=grid,
        in_specs=[pl.BlockSpec((block_rows, cols), lambda i: (i, 0))],
        out_specs=pl.BlockSpec((block_rows, cols), lambda i: (i, 0)),
        compiler_params=pltpu.CompilerParams(
            dimension_semantics=("parallel",),
            vmem_limit_bytes=vmem_limit,
        ),
        cost_estimate=cost,
    )(x2d)


def tlu(x: jax.Array, thr: float = 3.0) -> jax.Array:
    """Truncated linear unit: clamp(x, -thr, thr)."""
    # TODO(synk): if thr ever needs to be a traced JAX scalar, pass it as an
    # SMEM scalar operand instead of a static Python closure.
    orig_shape = x.shape
    flat = x.reshape(-1)
    n = flat.shape[0]

    # Lane-aligned prefix goes through the Pallas kernel (zero-copy reshape);
    # any tiny ragged tail (< 128 elements) is clamped with plain jnp.clip.
    # This avoids the pad + output-slice full-array copies on ragged inputs.
    n_main = n - (n % _LANE)

    if n_main == 0:
        # Degenerate tiny input: nothing lane-aligned to stream.
        return jnp.clip(flat, jnp.asarray(-thr, x.dtype),
                        jnp.asarray(thr, x.dtype)).reshape(orig_shape)

    main = flat[:n_main]

    # Wide lane-dense slab: cols = largest multiple of 128 dividing n_main,
    # capped at 2048 lanes (16 * 128).
    m = n_main // _LANE
    c = 1
    for cand in range(_MAX_LANE_BLOCKS, 0, -1):
        if m % cand == 0:
            c = cand
            break
    cols = c * _LANE
    rows = n_main // cols

    out_main = _tlu_2d(main.reshape(rows, cols), thr).reshape(-1)

    if n_main == n:
        return out_main.reshape(orig_shape)

    # Ragged fallback: clamp the short tail in plain JAX and reassemble.
    tail = flat[n_main:]
    out_tail = jnp.clip(tail, jnp.asarray(-thr, x.dtype),
                        jnp.asarray(thr, x.dtype))
    return jnp.concatenate([out_main, out_tail]).reshape(orig_shape)


if __name__ == "__main__":
    key = jax.random.PRNGKey(0)
    # NCHW input, small shapes (batch=2, channels=4, spatial=16).
    x = jax.random.normal(key, (2, 4, 16, 16), dtype=jnp.float32) * 5.0

    y = tlu(x, thr=3.0)
    y = jax.block_until_ready(y)

    # Reference check in plain JAX.
    y_ref = jnp.clip(x, -3.0, 3.0)
    assert y.shape == x.shape
    assert y.dtype == x.dtype
    assert jnp.allclose(y, y_ref), "mismatch vs reference clamp"

    print("KERNEL_OK")
</pallas_src>

<mosaic_0001>
module attributes {stable_mosaic.version = 11 : i64} {
  func.func @_tlu_kernel(%arg0: i32, %arg1: memref<1x2048xf32, #tpu.memory_space<vmem>>, %arg2: memref<1x2048xf32, #tpu.memory_space<vmem>>) attributes {dimension_semantics = [#tpu.dimension_semantics<parallel>], iteration_bounds = array<i64: 1>, scalar_prefetch = 0 : i64, scratch_operands = 0 : i64, tpu.core_type = #tpu.core_type<tc>, window_params = [{transform_indices = @transform_0, window_bounds = array<i64: 1, 2048>}, {transform_indices = @transform_1, window_bounds = array<i64: 1, 2048>}]} {
    %c0 = arith.constant 0 : index
    %c0_0 = arith.constant 0 : index
    %0 = vector.load %arg1[%c0, %c0_0] : memref<1x2048xf32, #tpu.memory_space<vmem>>, vector<1x2048xf32>
    %cst = arith.constant -3.000000e+00 : f32
    %cst_1 = arith.constant 3.000000e+00 : f32
    %1 = vector.broadcast %cst : f32 to vector<1x2048xf32>
    %2 = arith.maximumf %1, %0 : vector<1x2048xf32>
    %3 = vector.broadcast %cst_1 : f32 to vector<1x2048xf32>
    %4 = arith.minimumf %3, %2 : vector<1x2048xf32>
    %c0_2 = arith.constant 0 : index
    %c0_3 = arith.constant 0 : index
    %5 = vector.load %arg2[%c0_2, %c0_3] : memref<1x2048xf32, #tpu.memory_space<vmem>>, vector<1x2048xf32>
    tpu.vector_store %arg2[%c0_2, %c0_3], %4 {strides = array<i32>} : memref<1x2048xf32, #tpu.memory_space<vmem>>, vector<1x2048xf32>,
    return
  }
  func.func @transform_0(%arg0: i32) -> (i32, i32) {
    %c0_i32 = arith.constant 0 : i32
    %c0_i32_0 = arith.constant 0 : i32
    return %arg0, %c0_i32 : i32, i32
  }
  func.func @transform_1(%arg0: i32) -> (i32, i32) {
    %c0_i32 = arith.constant 0 : i32
    %c0_i32_0 = arith.constant 0 : i32
    return %arg0, %c0_i32 : i32, i32
  }
}

</mosaic_0001>

<llo_original>
// kernel: tpu_custom_call.1
$region0: #{tpu_custom_call.1}
  #allocation0 [shape = 'u32[]', space=smem, size = 0x4, offset = 0x4, fixed_abs, tag = 'smem constant byte address 0x4 - core index']
  #allocation1 [shape = 'u32[144,128]{1,0:T(1,128)}', space=vmem, size = 0x12000, scoped, tag = 'internal scratch']
  %s0 = inlined_call_operand.hbm [shape: f32[1,2048], index: 0, kind: input, shape index: {}]
  %s1 = inlined_call_operand.hbm [shape: f32[1,2048], index: 1, kind: output, shape index: {}]
  %s2 = sld [smem:[#allocation0]]
  $region18: #{tpu_custom_call.1} parent=0
    _
  %s4 = ssub.s32 1, %s2
  %s5 = scalar_select 0, %s4, %s2
  $region1: #{tpu_custom_call.1} parent=0
    #allocation2 [shape = 'u8[8192]{0}', space=vmem, size = 0x2000, scoped, tag = 'input window, operand 0, single buffered']
    #allocation3 [shape = 's32[1]{0}', space=sflag, size = 0x4, scoped, tag = 'scoped memory for tpu_custom_call.1']
    #allocation4 [shape = 's32[1]{0}', space=sflag, size = 0x4, scoped, tag = 'scoped memory for tpu_custom_call.1']
    #allocation5 [shape = 'u8[8192]{0}', space=vmem, size = 0x2000, scoped, tag = 'output window, operand 0, single buffered']
    %6 = vsyncpa [#allocation3], 0
    %7 = vsyncpa [#allocation4], 0
    // Predicated region
    $region2: #{tpu_custom_call.1} parent=1 // pred_check
      _
    $region3: #{tpu_custom_call.1} parent=1 // pred_check_branch
      %9 = sbr.rel (0) target = $region5
    $region4: #{tpu_custom_call.1} parent=1 // pred_region
      %s11 = ssub.s32 256, 256
      %12 = vsyncadd [#allocation3], %s11
      %s14 = sshll.u32 [#allocation2], 4
      %s15 = int_to_ptr.vmem [resolvable:$true] %s14
      %17 = dma.hbm_to_vmem [thread:$0]  %s0, 256, %s15, [#allocation3]
    $region5: #{tpu_custom_call.1} parent=1 // pred_fallthru
      _
    // Predicated region
    $region6: #{tpu_custom_call.1} parent=1 // pred_check
      _
    $region7: #{tpu_custom_call.1} parent=1 // pred_check_branch
      %19 = sbr.rel (0) target = $region9
    $region8: #{tpu_custom_call.1} parent=1 // pred_region
      %20 = dma.done [#allocation3], 256
    $region9: #{tpu_custom_call.1} parent=1 // pred_fallthru
      _
    %v21 = vld [vmem:[#allocation2] sm:$0xff]
    %v22 = vld [vmem:[#allocation2 + $0x8] sm:$0xff]
    %v23 = vmax.f32 %v21, -3.0
    %v24 = vmax.f32 %v22, -3.0
    %v25 = vmin.f32 %v23, 3.0
    %v26 = vmin.f32 %v24, 3.0
    %27 = vst [vmem:[#allocation5] sm:$0xff] %v25
    %28 = vst [vmem:[#allocation5 + $0x8] sm:$0xff] %v26
    // Predicated region
    $region10: #{tpu_custom_call.1} parent=1 // pred_check
      _
    $region11: #{tpu_custom_call.1} parent=1 // pred_check_branch
      %30 = sbr.rel (0) target = $region13
    $region12: #{tpu_custom_call.1} parent=1 // pred_region
      %s32 = ssub.s32 256, 256
      %33 = vsyncadd [#allocation4], %s32
      %s35 = sshll.u32 [#allocation5], 4
      %s36 = int_to_ptr.vmem [resolvable:$true] %s35
      %38 = dma.vmem_to_hbm [thread:$0]  %s36, 256, %s1, [#allocation4]
    $region13: #{tpu_custom_call.1} parent=1 // pred_fallthru
      _
    // Predicated region
    $region14: #{tpu_custom_call.1} parent=1 // pred_check
      _
    $region15: #{tpu_custom_call.1} parent=1 // pred_check_branch
      %40 = sbr.rel (0) target = $region17
    $region16: #{tpu_custom_call.1} parent=1 // pred_region
      %41 = dma.done [#allocation4], 256
    $region17: #{tpu_custom_call.1} parent=1 // pred_fallthru
      _
    %42 = vsyncpa [#allocation3], 1
    %43 = vsyncpa [#allocation4], 1

</llo_original>
